<compile_context>
chip_gen: v5e
topology: v5e:2x2
jax: 0.10.0
libtpu: 0.0.40
codegen_flags: <defaults>
</compile_context>

<pallas_src>
import functools

import jax
import jax.numpy as jnp
from jax import lax
from jax.experimental import pallas as pl
from jax.experimental.pallas import tpu as pltpu


# ----------------------------------------------------------------------------
# Fused kernel
# ----------------------------------------------------------------------------
def _fused_kernel(x_ref, w_ref, mask_ref, drop_ref, gamma_ref, beta_ref,
                  out_ref, sum_sc, sumsq_sc, *,
                  N, Nb, HW, W, CIN_P, eps, slope):
    L = Nb * HW
    step = pl.program_id(0)

    @pl.when(step == 0)
    def _init():
        sum_sc[...] = jnp.zeros_like(sum_sc)
        sumsq_sc[...] = jnp.zeros_like(sumsq_sc)

    x = x_ref[...]                       # (CIN_P, L) f32, channel-major, lane-dense
    masks = mask_ref[...]                # (9, L)    f32 precomputed boundary masks

    # ---- 3x3 conv as ONE im2col matmul (K = 9*CIN_P) ------------------------
    # Tap (kh,kw) needs x[:, p + s] with s = (kh-1)*W + (kw-1).  pltpu.roll on
    # the (otherwise idle) XLU provides the shift; the mask zeroes every output
    # position whose true source lies outside the sample's HxW window (implicit
    # zero padding), which also kills cross-sample / wrap-around leakage of the
    # circular roll over the flattened Nb*HW axis.
    taps = []
    k = 0
    for kh in range(3):
        for kw in range(3):
            s = (kh - 1) * W + (kw - 1)
            t = x if s == 0 else pltpu.roll(x, (-s) % L, axis=1)
            if not (kh == 1 and kw == 1):          # center tap needs no mask
                t = t * masks[k:k + 1, :]
            taps.append(t)
            k += 1
    patch = jnp.concatenate(taps, axis=0)          # (9*CIN_P, L), sublane-aligned

    # bf16 MXU operands (deliberate single-pass mode), f32 accumulation.
    acc = jnp.dot(w_ref[...], patch.astype(jnp.bfloat16),
                  preferred_element_type=jnp.float32)          # (Cout, L)
    # conv bias is already folded into w_ref via the constant-one input channel

    # ---- Dropout2d: per-(sample, channel) scale ------------------------------
    d = drop_ref[0]                                 # (Cout, 128), lanes 0..Nb-1 used
    pieces = []
    for nb in range(Nb):                            # static unroll, Nb small
        pieces.append(acc[:, nb * HW:(nb + 1) * HW] * d[:, nb:nb + 1])
    y = pieces[0] if Nb == 1 else jnp.concatenate(pieces, axis=1)   # (Cout, L)

    # ---- BatchNorm training statistics (one-pass sum / sum-of-squares) ------
    sum_sc[...] += jnp.sum(y, axis=1, keepdims=True)           # (Cout, 1)
    sumsq_sc[...] += jnp.sum(y * y, axis=1, keepdims=True)

    out_ref[step] = y                               # output stays VMEM-resident

    # ---- last grid step: normalize + affine + LeakyReLU, in place -----------
    @pl.when(step == pl.num_programs(0) - 1)
    def _finalize():
        inv_cnt = 1.0 / float(N * HW)
        mean = sum_sc[...] * inv_cnt                # (Cout, 1)
        var = sumsq_sc[...] * inv_cnt - mean * mean # biased var (torch BN training)
        inv = lax.rsqrt(var + eps)
        scale = (gamma_ref[...] * inv)[None]        # (1, Cout, 1)
        shift = (beta_ref[...] - mean * gamma_ref[...] * inv)[None]
        z = out_ref[...] * scale + shift            # (steps, Cout, L)
        out_ref[...] = jnp.where(z >= 0, z, slope * z)


# ----------------------------------------------------------------------------
# Wrapper (layout plumbing only)
# ----------------------------------------------------------------------------
def conv_dropout_norm_nonlin(x_nchw, w_oihw, bias, drop_scale, gamma, beta,
                             *, eps=1e-5, slope=0.01, max_lanes=4096):
    N, Cin, H, W = x_nchw.shape
    Cout = w_oihw.shape[0]
    HW = H * W

    # samples per grid step: largest divisor of N with Nb*HW lanes within budget
    Nb = 1
    for cand in range(1, N + 1):
        if N % cand == 0 and cand * HW <= max_lanes and cand <= 128:
            Nb = cand
    num_steps = N // Nb
    L = Nb * HW

    # pad channels to a sublane multiple, reserving one constant-1 channel
    # that carries the conv bias through the matmul.
    CIN_P = ((Cin + 1 + 7) // 8) * 8

    # ---- input: channel-major (CIN_P, N*HW); channel Cin == 1.0 everywhere --
    x = x_nchw.reshape(N, Cin, HW).astype(jnp.float32)
    ones = jnp.ones((N, 1, HW), jnp.float32)
    zpad = jnp.zeros((N, CIN_P - Cin - 1, HW), jnp.float32)
    x_cm = jnp.concatenate([x, ones, zpad], axis=1)                 # (N, CIN_P, HW)
    x_cm = jnp.transpose(x_cm, (1, 0, 2)).reshape(CIN_P, N * HW)    # (CIN_P, N*HW)

    # ---- weights: (Cout, 9*CIN_P) bf16, bias folded into the ones-channel ---
    w_t = jnp.transpose(w_oihw, (0, 2, 3, 1)).astype(jnp.float32)   # (Cout,3,3,Cin)
    w_t = jnp.pad(w_t, ((0, 0), (0, 0), (0, 0), (0, CIN_P - Cin)))  # (Cout,3,3,CIN_P)
    w_t = w_t.at[:, 1, 1, Cin].set(bias.astype(jnp.float32))        # center tap col
    wt = w_t.reshape(Cout, 9 * CIN_P).astype(jnp.bfloat16)

    # ---- 9 precomputed boundary masks, tiled to the per-step lane width -----
    r = jnp.arange(HW, dtype=jnp.int32) // W
    c = jnp.arange(HW, dtype=jnp.int32) % W
    rows = []
    for kh in range(3):
        for kw in range(3):
            dh, dw = kh - 1, kw - 1
            ok = jnp.ones((HW,), jnp.bool_)
            if dh == -1:
                ok = ok & (r >= 1)
            if dh == 1:
                ok = ok & (r <= H - 2)
            if dw == -1:
                ok = ok & (c >= 1)
            if dw == 1:
                ok = ok & (c <= W - 2)
            rows.append(ok)
    mask = jnp.stack(rows, axis=0).astype(jnp.float32)              # (9, HW)
    mask = jnp.tile(mask, (1, Nb))                                  # (9, L)

    # ---- Dropout2d per-(sample,channel) scales, per-step, lane-padded to 128
    drop = drop_scale.astype(jnp.float32).reshape(num_steps, Nb, Cout)
    drop = jnp.transpose(drop, (0, 2, 1))                           # (steps,Cout,Nb)
    drop_p = jnp.zeros((num_steps, Cout, 128), jnp.float32).at[:, :, :Nb].set(drop)

    g = gamma.reshape(Cout, 1).astype(jnp.float32)
    be = beta.reshape(Cout, 1).astype(jnp.float32)

    kernel = functools.partial(_fused_kernel, N=N, Nb=Nb, HW=HW, W=W,
                               CIN_P=CIN_P, eps=float(eps), slope=float(slope))

    out = pl.pallas_call(
        kernel,
        out_shape=jax.ShapeDtypeStruct((num_steps, Cout, L), jnp.float32),
        grid=(num_steps,),
        in_specs=[
            pl.BlockSpec((CIN_P, L), lambda s: (0, s)),             # per-step input slab
            pl.BlockSpec((Cout, 9 * CIN_P), lambda s: (0, 0)),      # weights (resident)
            pl.BlockSpec((9, L), lambda s: (0, 0)),                 # boundary masks (resident)
            pl.BlockSpec((1, Cout, 128), lambda s: (s, 0, 0)),      # dropout scales
            pl.BlockSpec((Cout, 1), lambda s: (0, 0)),              # gamma
            pl.BlockSpec((Cout, 1), lambda s: (0, 0)),              # beta
        ],
        # Constant index map => whole output resident in VMEM across the grid
        # (accumulator pattern); flushed to HBM once after the last step.
        out_specs=pl.BlockSpec((num_steps, Cout, L), lambda s: (0, 0, 0)),
        scratch_shapes=[pltpu.VMEM((Cout, 1), jnp.float32),         # sum
                        pltpu.VMEM((Cout, 1), jnp.float32)],        # sum of squares
        compiler_params=pltpu.CompilerParams(
            dimension_semantics=("arbitrary",),     # BN reduction + resident output
            vmem_limit_bytes=32 * 1024 * 1024),     # explicit; raise for bigger maps
    )(x_cm, wt, mask, drop_p, g, be)

    # (steps, Cout, Nb*HW) -> (N, Cout, H, W)
    out = out.reshape(num_steps, Cout, Nb, H, W)
    out = jnp.transpose(out, (0, 2, 1, 3, 4)).reshape(N, Cout, H, W)
    return out


# ----------------------------------------------------------------------------
# Pure-JAX reference (same training-mode semantics) for self-check
# ----------------------------------------------------------------------------
def _reference(x_nchw, w_oihw, bias, drop_scale, gamma, beta, eps=1e-5, slope=0.01):
    N, Cin, H, W = x_nchw.shape
    Cout = w_oihw.shape[0]
    y = lax.conv_general_dilated(
        x_nchw, w_oihw, window_strides=(1, 1), padding="SAME",
        dimension_numbers=("NCHW", "OIHW", "NCHW"))
    y = y + bias.reshape(1, Cout, 1, 1)
    y = y * drop_scale.reshape(N, Cout, 1, 1)
    mean = jnp.mean(y, axis=(0, 2, 3), keepdims=True)
    var = jnp.mean((y - mean) ** 2, axis=(0, 2, 3), keepdims=True)
    xn = (y - mean) * lax.rsqrt(var + eps)
    out = xn * gamma.reshape(1, Cout, 1, 1) + beta.reshape(1, Cout, 1, 1)
    return jnp.where(out >= 0, out, slope * out)


if __name__ == "__main__":
    N, Cin, Cout, H, W = 2, 4, 8, 16, 16
    p_drop = 0.5

    key = jax.random.PRNGKey(0)
    k_x, k_w, k_b, k_g, k_be, k_d = jax.random.split(key, 6)

    x = jax.random.normal(k_x, (N, Cin, H, W), dtype=jnp.float32)
    w = 0.1 * jax.random.normal(k_w, (Cout, Cin, 3, 3), dtype=jnp.float32)
    bias = 0.1 * jax.random.normal(k_b, (Cout,), dtype=jnp.float32)
    gamma = 1.0 + 0.1 * jax.random.normal(k_g, (Cout,), dtype=jnp.float32)
    beta = 0.1 * jax.random.normal(k_be, (Cout,), dtype=jnp.float32)

    # Dropout2d training mode: drop whole channels per sample with p=0.5 and
    # scale kept channels by 1/(1-p).  (RNG stream differs from torch.)
    keep = jax.random.bernoulli(k_d, 1.0 - p_drop, (N, Cout))
    drop_scale = keep.astype(jnp.float32) / (1.0 - p_drop)

    out = conv_dropout_norm_nonlin(x, w, bias, drop_scale, gamma, beta)
    out = jax.block_until_ready(out)

    ref = _reference(x, w, bias, drop_scale, gamma, beta)
    assert out.shape == (N, Cout, H, W)
    # bf16 MXU operands (deliberate) => bf16-level tolerance vs. the f32 reference.
    assert bool(jnp.allclose(out, ref, atol=2e-2, rtol=2e-2)), "mismatch vs reference"

    print("KERNEL_OK")
</pallas_src>

<mosaic_0001>
module attributes {stable_mosaic.version = 11 : i64} {
  func.func @_fused_kernel(%arg0: i32, %arg1: memref<8x512xf32, #tpu.memory_space<vmem>>, %arg2: memref<8x72xbf16, #tpu.memory_space<vmem>>, %arg3: memref<9x512xf32, #tpu.memory_space<vmem>>, %arg4: memref<1x8x128xf32, #tpu.memory_space<vmem>>, %arg5: memref<8x1xf32, #tpu.memory_space<vmem>>, %arg6: memref<8x1xf32, #tpu.memory_space<vmem>>, %arg7: memref<1x8x512xf32, #tpu.memory_space<vmem>>, %arg8: memref<8x1xf32, #tpu.memory_space<vmem>>, %arg9: memref<8x1xf32, #tpu.memory_space<vmem>>) attributes {dimension_semantics = [#tpu.dimension_semantics<arbitrary>], iteration_bounds = array<i64: 1>, scalar_prefetch = 0 : i64, scratch_operands = 2 : i64, tpu.core_type = #tpu.core_type<tc>, window_params = [{transform_indices = @transform_0, window_bounds = array<i64: 8, 512>}, {pipeline_mode = #tpu.pipeline_mode<synchronous>, transform_indices = @transform_1, window_bounds = array<i64: 8, 72>}, {pipeline_mode = #tpu.pipeline_mode<synchronous>, transform_indices = @transform_2, window_bounds = array<i64: 9, 512>}, {transform_indices = @transform_3, window_bounds = array<i64: 1, 8, 128>}, {pipeline_mode = #tpu.pipeline_mode<synchronous>, transform_indices = @transform_4, window_bounds = array<i64: 8, 1>}, {pipeline_mode = #tpu.pipeline_mode<synchronous>, transform_indices = @transform_5, window_bounds = array<i64: 8, 1>}, {pipeline_mode = #tpu.pipeline_mode<synchronous>, transform_indices = @transform_6, window_bounds = array<i64: 1, 8, 512>}]} {
    %c0_i32 = arith.constant 0 : i32
    %0 = arith.cmpi eq, %arg0, %c0_i32 : i32
    %1 = arith.extui %0 : i1 to i32
    %c0_i32_0 = arith.constant 0 : i32
    %2 = arith.cmpi ne, %1, %c0_i32_0 : i32
    scf.if %2 {
      %cst_23 = arith.constant 0.000000e+00 : f32
      %70 = vector.broadcast %cst_23 : f32 to vector<8x1xf32>
      %c0_24 = arith.constant 0 : index
      %c0_25 = arith.constant 0 : index
      %71 = vector.load %arg8[%c0_24, %c0_25] : memref<8x1xf32, #tpu.memory_space<vmem>>, vector<8x1xf32>
      tpu.vector_store %arg8[%c0_24, %c0_25], %70 {strides = array<i32>} : memref<8x1xf32, #tpu.memory_space<vmem>>, vector<8x1xf32>,
      %cst_26 = arith.constant 0.000000e+00 : f32
      %72 = vector.broadcast %cst_26 : f32 to vector<8x1xf32>
      %c0_27 = arith.constant 0 : index
      %c0_28 = arith.constant 0 : index
      %73 = vector.load %arg9[%c0_27, %c0_28] : memref<8x1xf32, #tpu.memory_space<vmem>>, vector<8x1xf32>
      tpu.vector_store %arg9[%c0_27, %c0_28], %72 {strides = array<i32>} : memref<8x1xf32, #tpu.memory_space<vmem>>, vector<8x1xf32>,
    } else {
    }
    %c0 = arith.constant 0 : index
    %c0_1 = arith.constant 0 : index
    %3 = vector.load %arg1[%c0, %c0_1] : memref<8x512xf32, #tpu.memory_space<vmem>>, vector<8x512xf32>
    %c0_2 = arith.constant 0 : index
    %c0_3 = arith.constant 0 : index
    %4 = vector.load %arg3[%c0_2, %c0_3] : memref<9x512xf32, #tpu.memory_space<vmem>>, vector<9x512xf32>
    %c17_i32 = arith.constant 17 : i32
    %5 = tpu.dynamic_rotate %3 by %c17_i32 dim 1 : vector<8x512xf32>, i32 -> vector<8x512xf32>
    %6 = vector.extract_strided_slice %4 {offsets = [0, 0], sizes = [1, 512], strides = [1, 1]} : vector<9x512xf32> to vector<1x512xf32>
    %7 = vector.broadcast %6 : vector<1x512xf32> to vector<8x512xf32>
    %8 = arith.mulf %5, %7 : vector<8x512xf32>
    %c16_i32 = arith.constant 16 : i32
    %9 = tpu.dynamic_rotate %3 by %c16_i32 dim 1 : vector<8x512xf32>, i32 -> vector<8x512xf32>
    %10 = vector.extract_strided_slice %4 {offsets = [1, 0], sizes = [1, 512], strides = [1, 1]} : vector<9x512xf32> to vector<1x512xf32>
    %11 = vector.broadcast %10 : vector<1x512xf32> to vector<8x512xf32>
    %12 = arith.mulf %9, %11 : vector<8x512xf32>
    %c15_i32 = arith.constant 15 : i32
    %13 = tpu.dynamic_rotate %3 by %c15_i32 dim 1 : vector<8x512xf32>, i32 -> vector<8x512xf32>
    %14 = vector.extract_strided_slice %4 {offsets = [2, 0], sizes = [1, 512], strides = [1, 1]} : vector<9x512xf32> to vector<1x512xf32>
    %15 = vector.broadcast %14 : vector<1x512xf32> to vector<8x512xf32>
    %16 = arith.mulf %13, %15 : vector<8x512xf32>
    %c1_i32 = arith.constant 1 : i32
    %17 = tpu.dynamic_rotate %3 by %c1_i32 dim 1 : vector<8x512xf32>, i32 -> vector<8x512xf32>
    %18 = vector.extract_strided_slice %4 {offsets = [3, 0], sizes = [1, 512], strides = [1, 1]} : vector<9x512xf32> to vector<1x512xf32>
    %19 = vector.broadcast %18 : vector<1x512xf32> to vector<8x512xf32>
    %20 = arith.mulf %17, %19 : vector<8x512xf32>
    %c511_i32 = arith.constant 511 : i32
    %21 = tpu.dynamic_rotate %3 by %c511_i32 dim 1 : vector<8x512xf32>, i32 -> vector<8x512xf32>
    %22 = vector.extract_strided_slice %4 {offsets = [5, 0], sizes = [1, 512], strides = [1, 1]} : vector<9x512xf32> to vector<1x512xf32>
    %23 = vector.broadcast %22 : vector<1x512xf32> to vector<8x512xf32>
    %24 = arith.mulf %21, %23 : vector<8x512xf32>
    %c497_i32 = arith.constant 497 : i32
    %25 = tpu.dynamic_rotate %3 by %c497_i32 dim 1 : vector<8x512xf32>, i32 -> vector<8x512xf32>
    %26 = vector.extract_strided_slice %4 {offsets = [6, 0], sizes = [1, 512], strides = [1, 1]} : vector<9x512xf32> to vector<1x512xf32>
    %27 = vector.broadcast %26 : vector<1x512xf32> to vector<8x512xf32>
    %28 = arith.mulf %25, %27 : vector<8x512xf32>
    %c496_i32 = arith.constant 496 : i32
    %29 = tpu.dynamic_rotate %3 by %c496_i32 dim 1 : vector<8x512xf32>, i32 -> vector<8x512xf32>
    %30 = vector.extract_strided_slice %4 {offsets = [7, 0], sizes = [1, 512], strides = [1, 1]} : vector<9x512xf32> to vector<1x512xf32>
    %31 = vector.broadcast %30 : vector<1x512xf32> to vector<8x512xf32>
    %32 = arith.mulf %29, %31 : vector<8x512xf32>
    %c495_i32 = arith.constant 495 : i32
    %33 = tpu.dynamic_rotate %3 by %c495_i32 dim 1 : vector<8x512xf32>, i32 -> vector<8x512xf32>
    %34 = vector.extract_strided_slice %4 {offsets = [8, 0], sizes = [1, 512], strides = [1, 1]} : vector<9x512xf32> to vector<1x512xf32>
    %35 = vector.broadcast %34 : vector<1x512xf32> to vector<8x512xf32>
    %36 = arith.mulf %33, %35 : vector<8x512xf32>
    %37 = tpu.concatenate %8, %12, %16, %20, %3, %24, %28, %32, %36 in 0 : vector<8x512xf32>, vector<8x512xf32>, vector<8x512xf32>, vector<8x512xf32>, vector<8x512xf32>, vector<8x512xf32>, vector<8x512xf32>, vector<8x512xf32>, vector<8x512xf32> -> vector<72x512xf32>
    %c0_4 = arith.constant 0 : index
    %c0_5 = arith.constant 0 : index
    %38 = vector.load %arg2[%c0_4, %c0_5] : memref<8x72xbf16, #tpu.memory_space<vmem>>, vector<8x72xbf16>
    %39 = arith.truncf %37 : vector<72x512xf32> to vector<72x512xbf16>
    %cst = arith.constant dense<0.000000e+00> : vector<8x512xf32>
    %40 = tpu.matmul %38, %39, %cst {dimension_numbers = #tpu.dot_dimension_numbers<[1], [0], [0], [1], [0, 0, 1, 1], [], []>} : vector<8x72xbf16>, vector<72x512xbf16>, vector<8x512xf32> -> vector<8x512xf32>
    %c0_6 = arith.constant 0 : index
    %c0_7 = arith.constant 0 : index
    %c0_8 = arith.constant 0 : index
    %41 = vector.load %arg4[%c0_6, %c0_7, %c0_8] : memref<1x8x128xf32, #tpu.memory_space<vmem>>, vector<1x8x128xf32>
    %42 = vector.shape_cast %41 : vector<1x8x128xf32> to vector<8x128xf32>
    %43 = vector.extract_strided_slice %40 {offsets = [0, 0], sizes = [8, 256], strides = [1, 1]} : vector<8x512xf32> to vector<8x256xf32>
    %44 = vector.extract_strided_slice %42 {offsets = [0, 0], sizes = [8, 1], strides = [1, 1]} : vector<8x128xf32> to vector<8x1xf32>
    %45 = vector.broadcast %44 : vector<8x1xf32> to vector<8x256xf32>
    %46 = arith.mulf %43, %45 : vector<8x256xf32>
    %47 = vector.extract_strided_slice %40 {offsets = [0, 256], sizes = [8, 256], strides = [1, 1]} : vector<8x512xf32> to vector<8x256xf32>
    %48 = vector.extract_strided_slice %42 {offsets = [0, 1], sizes = [8, 1], strides = [1, 1]} : vector<8x128xf32> to vector<8x1xf32>
    %49 = vector.broadcast %48 : vector<8x1xf32> to vector<8x256xf32>
    %50 = arith.mulf %47, %49 : vector<8x256xf32>
    %51 = tpu.concatenate %46, %50 in 1 : vector<8x256xf32>, vector<8x256xf32> -> vector<8x512xf32>
    %c0_9 = arith.constant 0 : index
    %c0_10 = arith.constant 0 : index
    %52 = vector.load %arg8[%c0_9, %c0_10] : memref<8x1xf32, #tpu.memory_space<vmem>>, vector<8x1xf32>
    %cst_11 = arith.constant dense<0.000000e+00> : vector<8xf32>
    %53 = vector.multi_reduction <add>, %51, %cst_11 [1] : vector<8x512xf32> to vector<8xf32>
    %54 = vector.shape_cast %53 : vector<8xf32> to vector<8x1xf32>
    %55 = arith.addf %52, %54 : vector<8x1xf32>
    %c0_12 = arith.constant 0 : index
    %c0_13 = arith.constant 0 : index
    %56 = vector.load %arg8[%c0_12, %c0_13] : memref<8x1xf32, #tpu.memory_space<vmem>>, vector<8x1xf32>
    tpu.vector_store %arg8[%c0_12, %c0_13], %55 {strides = array<i32>} : memref<8x1xf32, #tpu.memory_space<vmem>>, vector<8x1xf32>,
    %c0_14 = arith.constant 0 : index
    %c0_15 = arith.constant 0 : index
    %57 = vector.load %arg9[%c0_14, %c0_15] : memref<8x1xf32, #tpu.memory_space<vmem>>, vector<8x1xf32>
    %58 = arith.mulf %51, %51 : vector<8x512xf32>
    %cst_16 = arith.constant dense<0.000000e+00> : vector<8xf32>
    %59 = vector.multi_reduction <add>, %58, %cst_16 [1] : vector<8x512xf32> to vector<8xf32>
    %60 = vector.shape_cast %59 : vector<8xf32> to vector<8x1xf32>
    %61 = arith.addf %57, %60 : vector<8x1xf32>
    %c0_17 = arith.constant 0 : index
    %c0_18 = arith.constant 0 : index
    %62 = vector.load %arg9[%c0_17, %c0_18] : memref<8x1xf32, #tpu.memory_space<vmem>>, vector<8x1xf32>
    tpu.vector_store %arg9[%c0_17, %c0_18], %61 {strides = array<i32>} : memref<8x1xf32, #tpu.memory_space<vmem>>, vector<8x1xf32>,
    %63 = arith.index_cast %arg0 : i32 to index
    %c0_19 = arith.constant 0 : index
    %c0_20 = arith.constant 0 : index
    %64 = vector.load %arg7[%63, %c0_19, %c0_20] : memref<1x8x512xf32, #tpu.memory_space<vmem>>, vector<1x8x512xf32>
    %65 = vector.shape_cast %64 : vector<1x8x512xf32> to vector<8x512xf32>
    %66 = vector.shape_cast %51 : vector<8x512xf32> to vector<1x8x512xf32>
    tpu.vector_store %arg7[%63, %c0_19, %c0_20], %66 {strides = array<i32>} : memref<1x8x512xf32, #tpu.memory_space<vmem>>, vector<1x8x512xf32>,
    %c0_i32_21 = arith.constant 0 : i32
    %67 = arith.cmpi eq, %arg0, %c0_i32_21 : i32
    %68 = arith.extui %67 : i1 to i32
    %c0_i32_22 = arith.constant 0 : i32
    %69 = arith.cmpi ne, %68, %c0_i32_22 : i32
    scf.if %69 {
      %c0_23 = arith.constant 0 : index
      %c0_24 = arith.constant 0 : index
      %70 = vector.load %arg8[%c0_23, %c0_24] : memref<8x1xf32, #tpu.memory_space<vmem>>, vector<8x1xf32>
      %cst_25 = arith.constant 0.001953125 : f32
      %71 = vector.broadcast %cst_25 : f32 to vector<8x1xf32>
      %72 = arith.mulf %70, %71 : vector<8x1xf32>
      %c0_26 = arith.constant 0 : index
      %c0_27 = arith.constant 0 : index
      %73 = vector.load %arg9[%c0_26, %c0_27] : memref<8x1xf32, #tpu.memory_space<vmem>>, vector<8x1xf32>
      %cst_28 = arith.constant 0.001953125 : f32
      %74 = vector.broadcast %cst_28 : f32 to vector<8x1xf32>
      %75 = arith.mulf %73, %74 : vector<8x1xf32>
      %76 = arith.mulf %72, %72 : vector<8x1xf32>
      %77 = arith.subf %75, %76 : vector<8x1xf32>
      %cst_29 = arith.constant 9.99999974E-6 : f32
      %78 = vector.broadcast %cst_29 : f32 to vector<8x1xf32>
      %79 = arith.addf %77, %78 : vector<8x1xf32>
      %80 = math.rsqrt %79 : vector<8x1xf32>
      %c0_30 = arith.constant 0 : index
      %c0_31 = arith.constant 0 : index
      %81 = vector.load %arg5[%c0_30, %c0_31] : memref<8x1xf32, #tpu.memory_space<vmem>>, vector<8x1xf32>
      %82 = arith.mulf %81, %80 : vector<8x1xf32>
      %83 = vector.shape_cast %82 : vector<8x1xf32> to vector<1x8x1xf32>
      %c0_32 = arith.constant 0 : index
      %c0_33 = arith.constant 0 : index
      %84 = vector.load %arg6[%c0_32, %c0_33] : memref<8x1xf32, #tpu.memory_space<vmem>>, vector<8x1xf32>
      %c0_34 = arith.constant 0 : index
      %c0_35 = arith.constant 0 : index
      %85 = vector.load %arg5[%c0_34, %c0_35] : memref<8x1xf32, #tpu.memory_space<vmem>>, vector<8x1xf32>
      %86 = arith.mulf %72, %85 : vector<8x1xf32>
      %87 = arith.mulf %86, %80 : vector<8x1xf32>
      %88 = arith.subf %84, %87 : vector<8x1xf32>
      %89 = vector.shape_cast %88 : vector<8x1xf32> to vector<1x8x1xf32>
      %c0_36 = arith.constant 0 : index
      %c0_37 = arith.constant 0 : index
      %c0_38 = arith.constant 0 : index
      %90 = vector.load %arg7[%c0_36, %c0_37, %c0_38] : memref<1x8x512xf32, #tpu.memory_space<vmem>>, vector<1x8x512xf32>
      %91 = vector.broadcast %83 : vector<1x8x1xf32> to vector<1x8x512xf32>
      %92 = arith.mulf %90, %91 : vector<1x8x512xf32>
      %93 = vector.broadcast %89 : vector<1x8x1xf32> to vector<1x8x512xf32>
      %94 = arith.addf %92, %93 : vector<1x8x512xf32>
      %cst_39 = arith.constant 0.000000e+00 : f32
      %95 = vector.broadcast %cst_39 : f32 to vector<1x8x512xf32>
      %96 = arith.cmpf oge, %94, %95 : vector<1x8x512xf32>
      %cst_40 = arith.constant 0.00999999977 : f32
      %97 = vector.broadcast %cst_40 : f32 to vector<1x8x512xf32>
      %98 = arith.mulf %97, %94 : vector<1x8x512xf32>
      %99 = arith.select %96, %94, %98 : vector<1x8x512xi1>, vector<1x8x512xf32>
      %c0_41 = arith.constant 0 : index
      %c0_42 = arith.constant 0 : index
      %c0_43 = arith.constant 0 : index
      %100 = vector.load %arg7[%c0_41, %c0_42, %c0_43] : memref<1x8x512xf32, #tpu.memory_space<vmem>>, vector<1x8x512xf32>
      tpu.vector_store %arg7[%c0_41, %c0_42, %c0_43], %99 {strides = array<i32>} : memref<1x8x512xf32, #tpu.memory_space<vmem>>, vector<1x8x512xf32>,
    } else {
    }
    return
  }
  func.func @transform_0(%arg0: i32) -> (i32, i32) {
    %c0_i32 = arith.constant 0 : i32
    %c0_i32_0 = arith.constant 0 : i32
    return %c0_i32, %arg0 : i32, i32
  }
  func.func @transform_1(%arg0: i32) -> (i32, i32) {
    %c0_i32 = arith.constant 0 : i32
    %c0_i32_0 = arith.constant 0 : i32
    %c0_i32_1 = arith.constant 0 : i32
    return %c0_i32, %c0_i32_0 : i32, i32
  }
  func.func @transform_2(%arg0: i32) -> (i32, i32) {
    %c0_i32 = arith.constant 0 : i32
    %c0_i32_0 = arith.constant 0 : i32
    %c0_i32_1 = arith.constant 0 : i32
    return %c0_i32, %c0_i32_0 : i32, i32
  }
  func.func @transform_3(%arg0: i32) -> (i32, i32, i32) {
    %c0_i32 = arith.constant 0 : i32
    %c0_i32_0 = arith.constant 0 : i32
    %c0_i32_1 = arith.constant 0 : i32
    return %arg0, %c0_i32, %c0_i32_0 : i32, i32, i32
  }
  func.func @transform_4(%arg0: i32) -> (i32, i32) {
    %c0_i32 = arith.constant 0 : i32
    %c0_i32_0 = arith.constant 0 : i32
    %c0_i32_1 = arith.constant 0 : i32
    return %c0_i32, %c0_i32_0 : i32, i32
  }
  func.func @transform_5(%arg0: i32) -> (i32, i32) {
    %c0_i32 = arith.constant 0 : i32
    %c0_i32_0 = arith.constant 0 : i32
    %c0_i32_1 = arith.constant 0 : i32
    return %c0_i32, %c0_i32_0 : i32, i32
  }
  func.func @transform_6(%arg0: i32) -> (i32, i32, i32) {
    %c0_i32 = arith.constant 0 : i32
    %c0_i32_0 = arith.constant 0 : i32
    %c0_i32_1 = arith.constant 0 : i32
    %c0_i32_2 = arith.constant 0 : i32
    return %c0_i32, %c0_i32_0, %c0_i32_1 : i32, i32, i32
  }
}

</mosaic_0001>

<llo_original>
// kernel: tpu_custom_call.1
$region0: #{tpu_custom_call.1}
  #allocation0 [shape = 'u32[]', space=smem, size = 0x4, offset = 0x4, fixed_abs, tag = 'smem constant byte address 0x4 - core index']
  #allocation1 [shape = 'u32[72,128]{1,0:T(1,128)}', space=vmem, size = 0x9000, scoped, tag = 'internal scratch']
  #allocation2 [shape = 'f32[8,1]{1,0:T(8,128)}', space=vmem, size = 0x1000, scoped, tag = 'scratch operand']
  #allocation3 [shape = 'f32[8,1]{1,0:T(8,128)}', space=vmem, size = 0x1000, scoped, tag = 'scratch operand']
  %s0 = inlined_call_operand.hbm [shape: f32[8,512], index: 0, kind: input, shape index: {}]
  %s1 = inlined_call_operand.vmem [shape: bf16[8,72], index: 1, kind: input, shape index: {}]
  %s2 = inlined_call_operand.hbm [shape: f32[9,512], index: 2, kind: input, shape index: {}]
  %s3 = inlined_call_operand.vmem [shape: f32[1,8,128], index: 3, kind: input, shape index: {}]
  %s4 = inlined_call_operand.vmem [shape: f32[8,1], index: 4, kind: input, shape index: {}]
  %s5 = inlined_call_operand.vmem [shape: f32[8,1], index: 5, kind: input, shape index: {}]
  %s6 = inlined_call_operand.hbm [shape: f32[1,8,512], index: 6, kind: output, shape index: {}]
  %s7 = sld [smem:[#allocation0]]
  $region50: #{tpu_custom_call.1} parent=0
    _
  %s9 = ssub.s32 1, %s7
  %s10 = scalar_select 0, %s9, %s7
  $region1: #{tpu_custom_call.1} parent=0
    #allocation4 [shape = 'u8[16384]{0}', space=vmem, size = 0x4000, scoped, tag = 'input window, operand 0, single buffered']
    #allocation5 [shape = 's32[1]{0}', space=sflag, size = 0x4, scoped, tag = 'scoped memory for tpu_custom_call.1']
    #allocation6 [shape = 's32[1]{0}', space=sflag, size = 0x4, scoped, tag = 'scoped memory for tpu_custom_call.1']
    #allocation7 [shape = 'u8[32768]{0}', space=vmem, size = 0x8000, scoped, tag = 'input window, operand 2, single buffered']
    #allocation8 [shape = 's32[1]{0}', space=sflag, size = 0x4, scoped, tag = 'scoped memory for tpu_custom_call.1']
    #allocation9 [shape = 'u8[16384]{0}', space=vmem, size = 0x4000, scoped, tag = 'output window, operand 0, single buffered']
    %11 = vsyncpa [#allocation5], 0
    %12 = vsyncpa [#allocation8], 0
    %13 = vsyncpa [#allocation6], 0
    // Predicated region
    $region2: #{tpu_custom_call.1} parent=1 // pred_check
      _
    $region3: #{tpu_custom_call.1} parent=1 // pred_check_branch
      %15 = sbr.rel (0) target = $region5
    $region4: #{tpu_custom_call.1} parent=1 // pred_region
      %17 = vsyncadd [#allocation5], 0
      %s19 = sshll.u32 %s0, 4
      %s20 = int_to_ptr.hbm [resolvable:$true] %s19
      %s21 = sshll.u32 [#allocation4], 4
      %s22 = int_to_ptr.vmem [resolvable:$true] %s21
      %24 = dma.hbm_to_vmem [thread:$0]  %s20, 512, %s22, [#allocation5]
    $region5: #{tpu_custom_call.1} parent=1 // pred_fallthru
      _
    // Predicated region
    $region6: #{tpu_custom_call.1} parent=1 // pred_check
      _
    $region7: #{tpu_custom_call.1} parent=1 // pred_check_branch
      %26 = sbr.rel (0) target = $region9
    $region8: #{tpu_custom_call.1} parent=1 // pred_region
      _
    $region9: #{tpu_custom_call.1} parent=1 // pred_fallthru
      _
    // Predicated region
    $region10: #{tpu_custom_call.1} parent=1 // pred_check
      _
    $region11: #{tpu_custom_call.1} parent=1 // pred_check_branch
      %28 = sbr.rel (0) target = $region13
    $region12: #{tpu_custom_call.1} parent=1 // pred_region
      %30 = vsyncadd [#allocation8], 0
      %s31 = sshll.u32 %s2, 4
      %s32 = int_to_ptr.hbm [resolvable:$true] %s31
      %s33 = sshll.u32 [#allocation7], 4
      %s34 = int_to_ptr.vmem [resolvable:$true] %s33
      %39 = dma.hbm_to_vmem [thread:$0]  %s32, 1024, %s34, [#allocation8], 512, 512, 32
    $region13: #{tpu_custom_call.1} parent=1 // pred_fallthru
      _
    // Predicated region
    $region14: #{tpu_custom_call.1} parent=1 // pred_check
      _
    $region15: #{tpu_custom_call.1} parent=1 // pred_check_branch
      %41 = sbr.rel (0) target = $region17
    $region16: #{tpu_custom_call.1} parent=1 // pred_region
      _
    $region17: #{tpu_custom_call.1} parent=1 // pred_fallthru
      _
    // Predicated region
    $region18: #{tpu_custom_call.1} parent=1 // pred_check
      _
    $region19: #{tpu_custom_call.1} parent=1 // pred_check_branch
      %43 = sbr.rel (0) target = $region21
    $region20: #{tpu_custom_call.1} parent=1 // pred_region
      _
    $region21: #{tpu_custom_call.1} parent=1 // pred_fallthru
      _
    // Predicated region
    $region22: #{tpu_custom_call.1} parent=1 // pred_check
      _
    $region23: #{tpu_custom_call.1} parent=1 // pred_check_branch
      %45 = sbr.rel (0) target = $region25
    $region24: #{tpu_custom_call.1} parent=1 // pred_region
      _
    $region25: #{tpu_custom_call.1} parent=1 // pred_fallthru
      _
    // Predicated region
    $region26: #{tpu_custom_call.1} parent=1 // pred_check
      _
    $region27: #{tpu_custom_call.1} parent=1 // pred_check_branch
      %47 = sbr.rel (0) target = $region29
    $region28: #{tpu_custom_call.1} parent=1 // pred_region
      %49 = dma.done [#allocation5], 512
    $region29: #{tpu_custom_call.1} parent=1 // pred_fallthru
      _
    // Predicated region
    $region30: #{tpu_custom_call.1} parent=1 // pred_check
      _
    $region31: #{tpu_custom_call.1} parent=1 // pred_check_branch
      %51 = sbr.rel (0) target = $region33
    $region32: #{tpu_custom_call.1} parent=1 // pred_region
      %53 = dma.done [#allocation8], 1024
    $region33: #{tpu_custom_call.1} parent=1 // pred_fallthru
      _
    %p55 = scmp.eq.s32.totalorder 0, 0
    // Predicated region
    $region34: #{tpu_custom_call.1} parent=1 // pred_check
      %p56 = pneg %p55
    $region35: #{tpu_custom_call.1} parent=1 // pred_check_branch
      %58 = sbr.rel (%p56) target = $region37
    $region36: #{tpu_custom_call.1} parent=1 // pred_region
      %vm59 = vcmask 7168
      %60 = vst.msk [vmem:[#allocation2] sm:$0xff] %vm59, 0.0
      %61 = vst.msk [vmem:[#allocation3] sm:$0xff] %vm59, 0.0
    $region37: #{tpu_custom_call.1} parent=1 // pred_fallthru
      _
    %v62 = vld [vmem:[#allocation4] sm:$0xff]
    %v63 = vld [vmem:[#allocation4 + $0x8] sm:$0xff]
    %v64 = vld [vmem:[#allocation4 + $0x10] sm:$0xff]
    %v65 = vld [vmem:[#allocation4 + $0x18] sm:$0xff]
    %v66 = vld [vmem:[#allocation7] sm:$0xff]
    %v67 = vld [vmem:[#allocation7 + $0x8] sm:$0xff]
    %v68 = vld [vmem:[#allocation7 + $0x10] sm:$0xff]
    %v69 = vld [vmem:[#allocation7 + $0x18] sm:$0xff]
    %v70 = vld [vmem:[#allocation7 + $0x20] sm:$0x1]
    %v71 = vld [vmem:[#allocation7 + $0x28] sm:$0x1]
    %v72 = vld [vmem:[#allocation7 + $0x30] sm:$0x1]
    %v73 = vld [vmem:[#allocation7 + $0x38] sm:$0x1]
    %74 = vrot.lane.b32.xlu0 %v62, 17
    %v75 = vpop.permute.xlu0 %74
    %76 = vrot.lane.b32.xlu0 %v63, 17
    %v77 = vpop.permute.xlu0 %76
    %78 = vrot.lane.b32.xlu0 %v64, 17
    %v79 = vpop.permute.xlu0 %78
    %80 = vrot.lane.b32.xlu0 %v65, 17
    %v81 = vpop.permute.xlu0 %80
    %v82 = vlaneseq
    %v83 = vand.u32 %v82, 127
    %vm84 = vcmp.lt.s32.totalorder %v83, 17
    %v85 = vsel %vm84, %v79, %v81
    %v86 = vsel %vm84, %v77, %v79
    %v87 = vsel %vm84, %v75, %v77
    %v88 = vsel %vm84, %v81, %v75
    %v89 = vperm.slane %v66, 0
    %v90 = vperm.slane %v67, 0
    %v91 = vperm.slane %v68, 0
    %v92 = vperm.slane %v69, 0
    %v93 = vmul.f32 %v88, %v89
    %v94 = vmul.f32 %v87, %v90
    %v95 = vmul.f32 %v86, %v91
    %v96 = vmul.f32 %v85, %v92
    %97 = vrot.lane.b32.xlu0 %v62, 16
    %v98 = vpop.permute.xlu0 %97
    %99 = vrot.lane.b32.xlu0 %v63, 16
    %v100 = vpop.permute.xlu0 %99
    %101 = vrot.lane.b32.xlu0 %v64, 16
    %v102 = vpop.permute.xlu0 %101
    %103 = vrot.lane.b32.xlu0 %v65, 16
    %v104 = vpop.permute.xlu0 %103
    %vm105 = vcmp.lt.s32.totalorder %v83, 16
    %v106 = vsel %vm105, %v102, %v104
    %v107 = vsel %vm105, %v100, %v102
    %v108 = vsel %vm105, %v98, %v100
    %v109 = vsel %vm105, %v104, %v98
    %v110 = vperm.slane %v66, 1
    %v111 = vperm.slane %v67, 1
    %v112 = vperm.slane %v68, 1
    %v113 = vperm.slane %v69, 1
    %v114 = vmul.f32 %v109, %v110
    %v115 = vmul.f32 %v108, %v111
    %v116 = vmul.f32 %v107, %v112
    %v117 = vmul.f32 %v106, %v113
    %118 = vrot.lane.b32.xlu0 %v62, 15
    %v119 = vpop.permute.xlu0 %118
    %120 = vrot.lane.b32.xlu0 %v63, 15
    %v121 = vpop.permute.xlu0 %120
    %122 = vrot.lane.b32.xlu0 %v64, 15
    %v123 = vpop.permute.xlu0 %122
    %124 = vrot.lane.b32.xlu0 %v65, 15
    %v125 = vpop.permute.xlu0 %124
    %vm126 = vcmp.lt.s32.totalorder %v83, 15
    %v127 = vsel %vm126, %v123, %v125
    %v128 = vsel %vm126, %v121, %v123
    %v129 = vsel %vm126, %v119, %v121
    %v130 = vsel %vm126, %v125, %v119
    %v131 = vperm.slane %v66, 2
    %v132 = vperm.slane %v67, 2
    %v133 = vperm.slane %v68, 2
    %v134 = vperm.slane %v69, 2
    %v135 = vmul.f32 %v130, %v131
    %v136 = vmul.f32 %v129, %v132
    %v137 = vmul.f32 %v128, %v133
    %v138 = vmul.f32 %v127, %v134
    %139 = vrot.lane.b32.xlu0 %v62, 1
    %v140 = vpop.permute.xlu0 %139
    %141 = vrot.lane.b32.xlu0 %v63, 1
    %v142 = vpop.permute.xlu0 %141
    %143 = vrot.lane.b32.xlu0 %v64, 1
    %v144 = vpop.permute.xlu0 %143
    %145 = vrot.lane.b32.xlu0 %v65, 1
    %v146 = vpop.permute.xlu0 %145
    %vm147 = vcmp.lt.s32.totalorder %v83, 1
    %v148 = vsel %vm147, %v144, %v146
    %v149 = vsel %vm147, %v142, %v144
    %v150 = vsel %vm147, %v140, %v142
    %v151 = vsel %vm147, %v146, %v140
    %v152 = vperm.slane %v66, 3
    %v153 = vperm.slane %v67, 3
    %v154 = vperm.slane %v68, 3
    %v155 = vperm.slane %v69, 3
    %v156 = vmul.f32 %v151, %v152
    %v157 = vmul.f32 %v150, %v153
    %v158 = vmul.f32 %v149, %v154
    %v159 = vmul.f32 %v148, %v155
    %160 = vrot.lane.b32.xlu0 %v62, 127
    %v161 = vpop.permute.xlu0 %160
    %162 = vrot.lane.b32.xlu0 %v63, 127
    %v163 = vpop.permute.xlu0 %162
    %164 = vrot.lane.b32.xlu0 %v64, 127
    %v165 = vpop.permute.xlu0 %164
    %166 = vrot.lane.b32.xlu0 %v65, 127
    %v167 = vpop.permute.xlu0 %166
    %vm168 = vcmp.lt.s32.totalorder %v83, 127
    %v169 = vsel %vm168, %v165, %v167
    %v170 = vsel %vm168, %v163, %v165
    %v171 = vsel %vm168, %v161, %v163
    %v172 = vsel %vm168, %v167, %v161
    %v173 = vperm.slane %v66, 5
    %v174 = vperm.slane %v67, 5
    %v175 = vperm.slane %v68, 5
    %v176 = vperm.slane %v69, 5
    %v177 = vmul.f32 %v171, %v173
    %v178 = vmul.f32 %v170, %v174
    %v179 = vmul.f32 %v169, %v175
    %v180 = vmul.f32 %v172, %v176
    %181 = vrot.lane.b32.xlu0 %v62, 113
    %v182 = vpop.permute.xlu0 %181
    %183 = vrot.lane.b32.xlu0 %v63, 113
    %v184 = vpop.permute.xlu0 %183
    %185 = vrot.lane.b32.xlu0 %v64, 113
    %v186 = vpop.permute.xlu0 %185
    %187 = vrot.lane.b32.xlu0 %v65, 113
    %v188 = vpop.permute.xlu0 %187
    %vm189 = vcmp.lt.s32.totalorder %v83, 113
    %v190 = vsel %vm189, %v186, %v188
    %v191 = vsel %vm189, %v184, %v186
    %v192 = vsel %vm189, %v182, %v184
    %v193 = vsel %vm189, %v188, %v182
    %v194 = vperm.slane %v66, 6
    %v195 = vperm.slane %v67, 6
    %v196 = vperm.slane %v68, 6
    %v197 = vperm.slane %v69, 6
    %v198 = vmul.f32 %v192, %v194
    %v199 = vmul.f32 %v191, %v195
    %v200 = vmul.f32 %v190, %v196
    %v201 = vmul.f32 %v193, %v197
    %202 = vrot.lane.b32.xlu0 %v62, 112
    %v203 = vpop.permute.xlu0 %202
    %204 = vrot.lane.b32.xlu0 %v63, 112
    %v205 = vpop.permute.xlu0 %204
    %206 = vrot.lane.b32.xlu0 %v64, 112
    %v207 = vpop.permute.xlu0 %206
    %208 = vrot.lane.b32.xlu0 %v65, 112
    %v209 = vpop.permute.xlu0 %208
    %vm210 = vcmp.lt.s32.totalorder %v83, 112
    %v211 = vsel %vm210, %v207, %v209
    %v212 = vsel %vm210, %v205, %v207
    %v213 = vsel %vm210, %v203, %v205
    %v214 = vsel %vm210, %v209, %v203
    %v215 = vperm.slane %v66, 7
    %v216 = vperm.slane %v67, 7
    %v217 = vperm.slane %v68, 7
    %v218 = vperm.slane %v69, 7
    %v219 = vmul.f32 %v213, %v215
    %v220 = vmul.f32 %v212, %v216
    %v221 = vmul.f32 %v211, %v217
    %v222 = vmul.f32 %v214, %v218
    %223 = vrot.lane.b32.xlu0 %v62, 111
    %v224 = vpop.permute.xlu0 %223
    %225 = vrot.lane.b32.xlu0 %v63, 111
    %v226 = vpop.permute.xlu0 %225
    %227 = vrot.lane.b32.xlu0 %v64, 111
    %v228 = vpop.permute.xlu0 %227
    %229 = vrot.lane.b32.xlu0 %v65, 111
    %v230 = vpop.permute.xlu0 %229
    %vm231 = vcmp.lt.s32.totalorder %v83, 111
    %v232 = vsel %vm231, %v228, %v230
    %v233 = vsel %vm231, %v226, %v228
    %v234 = vsel %vm231, %v224, %v226
    %v235 = vsel %vm231, %v230, %v224
    %v236 = vperm.slane %v70, 0
    %v237 = vperm.slane %v71, 0
    %v238 = vperm.slane %v72, 0
    %v239 = vperm.slane %v73, 0
    %v240 = vmul.f32 %v234, %v236
    %v241 = vmul.f32 %v233, %v237
    %v242 = vmul.f32 %v232, %v238
    %v243 = vmul.f32 %v235, %v239
    %v244 = vld [vmem:[%s1] sm:$0xf]
    %v245 = vpack.c.bf16 %v114, %v93
    %v246 = vpack.c.bf16 %v115, %v94
    %v247 = vpack.c.bf16 %v116, %v95
    %v248 = vpack.c.bf16 %v117, %v96
    %v249 = vpack.c.bf16 %v156, %v135
    %v250 = vpack.c.bf16 %v157, %v136
    %v251 = vpack.c.bf16 %v158, %v137
    %v252 = vpack.c.bf16 %v159, %v138
    %v253 = vpack.c.bf16 %v177, %v62
    %v254 = vpack.c.bf16 %v178, %v63
    %v255 = vpack.c.bf16 %v179, %v64
    %v256 = vpack.c.bf16 %v180, %v65
    %v257 = vpack.c.bf16 %v219, %v198
    %v258 = vpack.c.bf16 %v220, %v199
    %v259 = vpack.c.bf16 %v221, %v200
    %v260 = vpack.c.bf16 %v222, %v201
    %v261 = vpack.c.bf16 %v240, %v240
    %v262 = vpack.c.bf16 %v241, %v241
    %v263 = vpack.c.bf16 %v242, %v242
    %v264 = vpack.c.bf16 %v243, %v243
    %vm265 = vcmask 588800
    %v267 = vsel %vm265, %v244, 0
    %vm269 = vcmask 1043456
    %v271 = vsel %vm269, %v261, 0
    %v274 = vsel %vm269, %v262, 0
    %v277 = vsel %vm269, %v263, 0
    %v280 = vsel %vm269, %v264, 0
    %282 = vmatpush.bf16.msra.mxu0 0
    %283 = vmatpush.bf16.msra.mxu0 0
    %284 = vmatpush.bf16.msra.mxu0 0
    %285 = vmatpush.bf16.msra.mxu0 %v271
    %286 = vmatpush.bf16.msra.mxu0 %v257
    %287 = vmatpush.bf16.msra.mxu0 %v253
    %288 = vmatpush.bf16.msra.mxu0 %v249
    %289 = vmatpush.bf16.msra.mxu0 %v245
    %290 = vmatmul.bf16.gmra.mxu0 %v267
    %v291 = vpop.f32.mrf.mxu0
    %v292 = vadd.f32 0.0, %v291
    %v293 = vpop.f32.mrf.mxu0
    %294 = vdwg.mxu0
    %295 = vmatpush.bf16.msra.mxu0 0
    %296 = vmatpush.bf16.msra.mxu0 0
    %297 = vmatpush.bf16.msra.mxu0 0
    %298 = vmatpush.bf16.msra.mxu0 %v274
    %299 = vmatpush.bf16.msra.mxu0 %v258
    %300 = vmatpush.bf16.msra.mxu0 %v254
    %301 = vmatpush.bf16.msra.mxu0 %v250
    %302 = vmatpush.bf16.msra.mxu0 %v246
    %303 = vmatmul.bf16.gmra.mxu0 %v267
    %v304 = vpop.f32.mrf.mxu0
    %v305 = vadd.f32 0.0, %v304
    %v306 = vpop.f32.mrf.mxu0
    %307 = vdwg.mxu0
    %308 = vmatpush.bf16.msra.mxu0 0
    %309 = vmatpush.bf16.msra.mxu0 0
    %310 = vmatpush.bf16.msra.mxu0 0
    %311 = vmatpush.bf16.msra.mxu0 %v277
    %312 = vmatpush.bf16.msra.mxu0 %v259
    %313 = vmatpush.bf16.msra.mxu0 %v255
    %314 = vmatpush.bf16.msra.mxu0 %v251
    %315 = vmatpush.bf16.msra.mxu0 %v247
    %316 = vmatmul.bf16.gmra.mxu0 %v267
    %v317 = vpop.f32.mrf.mxu0
    %v318 = vadd.f32 0.0, %v317
    %v319 = vpop.f32.mrf.mxu0
    %320 = vdwg.mxu0
    %321 = vmatpush.bf16.msra.mxu0 0
    %322 = vmatpush.bf16.msra.mxu0 0
    %323 = vmatpush.bf16.msra.mxu0 0
    %324 = vmatpush.bf16.msra.mxu0 %v280
    %325 = vmatpush.bf16.msra.mxu0 %v260
    %326 = vmatpush.bf16.msra.mxu0 %v256
    %327 = vmatpush.bf16.msra.mxu0 %v252
    %328 = vmatpush.bf16.msra.mxu0 %v248
    %329 = vmatmul.bf16.gmra.mxu0 %v267
    %v330 = vpop.f32.mrf.mxu0
    %v331 = vadd.f32 0.0, %v330
    %v332 = vpop.f32.mrf.mxu0
    %333 = vdwg.mxu0
    %v334 = vld [vmem:[%s3] sm:$0xff]
    %336 = vset.pattern.permute.xlu0 0
    %337 = vperm.xlu0 %336, %v334
    %v338 = vpop.permute.xlu0 %337
    %v340 = vmul.f32 %v292, %v338
    %v341 = vmul.f32 %v305, %v338
    %342 = vset.pattern.permute.xlu0 1
    %343 = vperm.xlu0 %342, %v334
    %v344 = vpop.permute.xlu0 %343
    %v346 = vmul.f32 %v318, %v344
    %v347 = vmul.f32 %v331, %v344
    %v348 = vld [vmem:[#allocation2] sm:$0xff]
    %v349 = vadd.f32 %v340, %v341
    %v350 = vadd.f32 %v349, %v346
    %v351 = vadd.f32 %v350, %v347
    %352 = vadd.xlane.f32.xlu0 %v351
    %v353 = vpop.xlane.xlu0 %352
    %v354 = vadd.f32 %v348, %v353
    %vm355 = vcmask 7168
    %356 = vst.msk [vmem:[#allocation2] sm:$0xff] %vm355, %v354
    %v357 = vld [vmem:[#allocation3] sm:$0xff]
    %v358 = vmul.f32 %v340, %v340
    %v359 = vmul.f32 %v341, %v341
    %v360 = vmul.f32 %v346, %v346
    %v361 = vmul.f32 %v347, %v347
    %v362 = vadd.f32 %v358, %v359
    %v363 = vadd.f32 %v362, %v360
    %v364 = vadd.f32 %v363, %v361
    %365 = vadd.xlane.f32.xlu0 %v364
    %v366 = vpop.xlane.xlu0 %365
    %v367 = vadd.f32 %v357, %v366
    %368 = vst.msk [vmem:[#allocation3] sm:$0xff] %vm355, %v367
    %s369 = smul.u32 0, 4
    %s370 = smul.addr %s369, 8
    %s371 = scalar_lea.vmem [#allocation9], %s370
    %372 = vst [vmem:[%s371] sm:$0xff] %v340
    %373 = vst [vmem:[%s371 + $0x8] sm:$0xff] %v341
    %374 = vst [vmem:[%s371 + $0x10] sm:$0xff] %v346
    %375 = vst [vmem:[%s371 + $0x18] sm:$0xff] %v347
    // Predicated region
    $region38: #{tpu_custom_call.1} parent=1 // pred_check
      %p376 = pneg %p55
    $region39: #{tpu_custom_call.1} parent=1 // pred_check_branch
      %378 = sbr.rel (%p376) target = $region41
    $region40: #{tpu_custom_call.1} parent=1 // pred_region
      %v379 = vld [vmem:[#allocation2] sm:$0xff]
      %v380 = vmul.f32 %v379, 0.001953125
      %v381 = vld [vmem:[#allocation3] sm:$0xff]
      %v382 = vmul.f32 %v381, 0.001953125
      %v383 = vmul.f32 %v380, %v380
      %v384 = vsub.f32 %v382, %v383
      %v385 = vadd.f32 %v384, 1e-05
      %v386 = vrsqrt.pop %v385
      %v387 = vmul.f32 %v386, %v385
      %v388 = vmul.f32 %v387, %v386
      %v389 = vmul.f32 0.5, %v388
      %v390 = vsub.f32 1.5, %v389
      %v391 = vmul.f32 %v386, %v390
      %vm392 = vweird.f32 %v385
      %vm393 = vweird.f32 %v386
      %vm394 = vmor %vm392, %vm393
      %v395 = vsel %vm394, %v386, %v391
      %v396 = vld [vmem:[%s4] sm:$0xff]
      %v397 = vmul.f32 %v396, %v395
      %v398 = vld [vmem:[%s5] sm:$0xff]
      %v399 = vmul.f32 %v380, %v396
      %v400 = vmul.f32 %v399, %v395
      %v401 = vsub.f32 %v398, %v400
      %v402 = vld [vmem:[#allocation9] sm:$0xff]
      %v403 = vld [vmem:[#allocation9 + $0x8] sm:$0xff]
      %v404 = vld [vmem:[#allocation9 + $0x10] sm:$0xff]
      %v405 = vld [vmem:[#allocation9 + $0x18] sm:$0xff]
      %407 = vset.pattern.permute.xlu0 0
      %408 = vperm.xlu0 %407, %v397
      %v409 = vpop.permute.xlu0 %408
      %v411 = vmul.f32 %v402, %v409
      %v412 = vmul.f32 %v403, %v409
      %v413 = vmul.f32 %v404, %v409
      %v414 = vmul.f32 %v405, %v409
      %416 = vset.pattern.permute.xlu0 0
      %417 = vperm.xlu0 %416, %v401
      %v418 = vpop.permute.xlu0 %417
      %v420 = vadd.f32 %v411, %v418
      %v421 = vadd.f32 %v412, %v418
      %v422 = vadd.f32 %v413, %v418
      %v423 = vadd.f32 %v414, %v418
      %vm424 = vcmp.ge.f32.partialorder %v420, 0.0
      %vm425 = vcmp.ge.f32.partialorder %v421, 0.0
      %vm426 = vcmp.ge.f32.partialorder %v422, 0.0
      %vm427 = vcmp.ge.f32.partialorder %v423, 0.0
      %v428 = vmul.f32 %v420, 0.01
      %v429 = vmul.f32 %v421, 0.01
      %v430 = vmul.f32 %v422, 0.01
      %v431 = vmul.f32 %v423, 0.01
      %v432 = vsel %vm424, %v420, %v428
      %v433 = vsel %vm425, %v421, %v429
      %v434 = vsel %vm426, %v422, %v430
      %v435 = vsel %vm427, %v423, %v431
      %436 = vst [vmem:[#allocation9] sm:$0xff] %v432
      %437 = vst [vmem:[#allocation9 + $0x8] sm:$0xff] %v433
      %438 = vst [vmem:[#allocation9 + $0x10] sm:$0xff] %v434
      %439 = vst [vmem:[#allocation9 + $0x18] sm:$0xff] %v435
    $region41: #{tpu_custom_call.1} parent=1 // pred_fallthru
      _
    // Predicated region
    $region42: #{tpu_custom_call.1} parent=1 // pred_check
      _
    $region43: #{tpu_custom_call.1} parent=1 // pred_check_branch
      %441 = sbr.rel (0) target = $region45
    $region44: #{tpu_custom_call.1} parent=1 // pred_region
      %443 = vsyncadd [#allocation6], 0
      %s445 = sshll.u32 [#allocation9], 4
      %s446 = int_to_ptr.vmem [resolvable:$true] %s445
      %s447 = sshll.u32 %s6, 4
      %s448 = int_to_ptr.hbm [resolvable:$true] %s447
      %450 = dma.vmem_to_hbm [thread:$0]  %s446, 512, %s448, [#allocation6]
    $region45: #{tpu_custom_call.1} parent=1 // pred_fallthru
      _
    // Predicated region
    $region46: #{tpu_custom_call.1} parent=1 // pred_check
      _
    $region47: #{tpu_custom_call.1} parent=1 // pred_check_branch
      %452 = sbr.rel (0) target = $region49
    $region48: #{tpu_custom_call.1} parent=1 // pred_region
      %454 = dma.done [#allocation6], 512
    $region49: #{tpu_custom_call.1} parent=1 // pred_fallthru
      _
    %455 = vsyncpa [#allocation5], 1
    %456 = vsyncpa [#allocation8], 1
    %457 = vsyncpa [#allocation6], 1

</llo_original>
